<compile_context>
chip_gen: v6e
topology: v6e:2x2x1
jax: 0.10.0
libtpu: 0.0.40
codegen_flags: <defaults>
</compile_context>

<pallas_src>
import functools

import jax
import jax.numpy as jnp
from jax.experimental import pallas as pl
from jax.experimental.pallas import tpu as pltpu

HIDDEN = 64
LANE = 128


def _round_up(x, m):
    return ((x + m - 1) // m) * m


def _pad2(a, rows, cols):
    r, c = a.shape
    return jnp.pad(a, ((0, rows - r), (0, cols - c)))


def label_encoder_kernel(idx_ref, t1_ref, b1_ref,
                         w2_ref, b2_ref,
                         w3_ref, b3_ref,
                         o_ref):
    """Fused: relu(onehot(ids) @ (E@W1) + b1) -> relu(.@W2+b2) -> .@W3+b3."""
    ids = idx_ref[...]                                   # (bb, 1) int32
    bb = ids.shape[0]
    ncat_p = t1_ref.shape[0]

    # Embedding lookup + fc1 as a single one-hot matmul against the pre-folded
    # table T1 = E @ W1 (exact: one bf16 row selected per id, zeros elsewhere).
    iota = jax.lax.broadcasted_iota(jnp.int32, (bb, ncat_p), 1)
    onehot = (iota == ids).astype(jnp.bfloat16)          # (bb, ncat_p)
    h = jnp.dot(onehot, t1_ref[...],
                preferred_element_type=jnp.float32) + b1_ref[...]   # (bb, 128) f32
    h = jnp.maximum(h, 0.0)

    h = jnp.dot(h.astype(jnp.bfloat16), w2_ref[...],
                preferred_element_type=jnp.float32) + b2_ref[...]
    h = jnp.maximum(h, 0.0)

    h = jnp.dot(h.astype(jnp.bfloat16), w3_ref[...],
                preferred_element_type=jnp.float32) + b3_ref[...]

    o_ref[...] = h.astype(o_ref.dtype)


@functools.partial(jax.jit, static_argnames=("block_b",))
def label_encoder_forward(ids, params, block_b=512):
    """ids: (B,) int32 category indices. params: emb (C,E), w1..w3 (in,out), b1..b3 (1,out)."""
    (B,) = ids.shape
    num_categories, embedding_dim = params["emb"].shape

    # --- static tile selection (Python ints, known at trace time) ---------------
    # Big tile (default 512) for pipeline-overhead amortization, but keep >=2 grid
    # steps when B allows so ("parallel",) can use both TensorCores on v7x.
    half = _round_up(pl.cdiv(B, 2), 8)
    bb = max(8, min(block_b, half))
    grid_m = pl.cdiv(B, bb)

    ncat_p = _round_up(num_categories, LANE)
    edim_p = _round_up(embedding_dim, LANE)
    hid_p = _round_up(HIDDEN, LANE)

    # --- fold fc1 into the embedding table (param-only precompute over C rows) --
    # relu(E[id] @ W1 + b1) == relu((E @ W1)[id] + b1); strictly fewer FLOPs when
    # B > C and one fewer MXU pass per batch tile inside the kernel.
    t1 = jnp.dot(params["emb"], params["w1"])            # (C, 64) f32

    # --- zero-pad params to lane-dense (128) widths; matmul operands in bf16 ----
    # Padding is correctness-preserving: padded W rows are zero (dead inputs),
    # padded W cols + zero bias give ReLU(0)=0 in the padded lanes, and the
    # padded output columns are sliced off below.
    t1_p = _pad2(t1, ncat_p, hid_p).astype(jnp.bfloat16)
    w2_p = _pad2(params["w2"], hid_p, hid_p).astype(jnp.bfloat16)
    w3_p = _pad2(params["w3"], hid_p, edim_p).astype(jnp.bfloat16)
    b1_p = _pad2(params["b1"], 1, hid_p).astype(jnp.float32)
    b2_p = _pad2(params["b2"], 1, hid_p).astype(jnp.float32)
    b3_p = _pad2(params["b3"], 1, edim_p).astype(jnp.float32)

    ids2 = ids.reshape(B, 1).astype(jnp.int32)

    def full(shape):
        # Grid-invariant operand: same (0, 0) block every step (fetched once).
        return pl.BlockSpec(shape, lambda i: (0, 0))

    in_specs = [
        pl.BlockSpec((bb, 1), lambda i: (i, 0)),     # ids tile (batch on sublanes)
        full(t1_p.shape), full(b1_p.shape),
        full(w2_p.shape), full(b2_p.shape),
        full(w3_p.shape), full(b3_p.shape),
    ]
    out_spec = pl.BlockSpec((bb, edim_p), lambda i: (i, 0))   # lane-dense (128) store

    flops = 2 * B * (ncat_p * hid_p + hid_p * hid_p + hid_p * edim_p)
    bytes_accessed = (ids2.size * 4 + B * edim_p * 4
                      + (t1_p.size + w2_p.size + w3_p.size) * 2
                      + (b1_p.size + b2_p.size + b3_p.size) * 4)
    cost = pl.CostEstimate(flops=flops, transcendentals=0,
                           bytes_accessed=bytes_accessed)

    out_padded = pl.pallas_call(
        label_encoder_kernel,
        out_shape=jax.ShapeDtypeStruct((B, edim_p), jnp.float32),
        grid_spec=pltpu.PrefetchScalarGridSpec(
            num_scalar_prefetch=0,
            grid=(grid_m,),
            in_specs=in_specs,
            out_specs=out_spec,
        ),
        compiler_params=pltpu.CompilerParams(
            dimension_semantics=("parallel",),
        ),
        cost_estimate=cost,
    )(ids2, t1_p, b1_p, w2_p, b2_p, w3_p, b3_p)

    return out_padded[:, :embedding_dim]


def init_params(key, num_categories, embedding_dim):
    """Mimics PyTorch init: Embedding ~ N(0,1); Linear ~ U(+-1/sqrt(fan_in)).
    Linear weights are stored pre-transposed as (in_features, out_features)."""
    k_emb, k1, kb1, k2, kb2, k3, kb3 = jax.random.split(key, 7)
    params = {
        "emb": jax.random.normal(k_emb, (num_categories, embedding_dim), jnp.float32)
    }
    dims = [(embedding_dim, HIDDEN), (HIDDEN, HIDDEN), (HIDDEN, embedding_dim)]
    wkeys, bkeys = [k1, k2, k3], [kb1, kb2, kb3]
    for i, (fan_in, fan_out) in enumerate(dims):
        bound = 1.0 / (fan_in ** 0.5)
        params[f"w{i + 1}"] = jax.random.uniform(
            wkeys[i], (fan_in, fan_out), jnp.float32, minval=-bound, maxval=bound)
        params[f"b{i + 1}"] = jax.random.uniform(
            bkeys[i], (1, fan_out), jnp.float32, minval=-bound, maxval=bound)
    return params


def reference_forward_f32(ids, params):
    """Pure f32 reference (module semantics)."""
    emb = params["emb"][ids]
    h = jnp.maximum(emb @ params["w1"] + params["b1"], 0.0)
    h = jnp.maximum(h @ params["w2"] + params["b2"], 0.0)
    return h @ params["w3"] + params["b3"]


def reference_forward_bf16(ids, params):
    """Reference mirroring the kernel's folded-table / bf16-matmul / f32-acc path."""
    t1 = jnp.dot(params["emb"], params["w1"]).astype(jnp.bfloat16)  # folded E @ W1
    h = t1[ids].astype(jnp.float32) + params["b1"]
    h = jnp.maximum(h, 0.0)
    h = jnp.dot(h.astype(jnp.bfloat16), params["w2"].astype(jnp.bfloat16),
                preferred_element_type=jnp.float32) + params["b2"]
    h = jnp.maximum(h, 0.0)
    return jnp.dot(h.astype(jnp.bfloat16), params["w3"].astype(jnp.bfloat16),
                   preferred_element_type=jnp.float32) + params["b3"]


if __name__ == "__main__":
    key = jax.random.PRNGKey(0)
    k_ids, k_p = jax.random.split(key)

    batch = 16
    num_categories = 10
    embedding_dim = 32

    ids = jax.random.randint(k_ids, (batch,), 0, num_categories, dtype=jnp.int32)
    params = init_params(k_p, num_categories, embedding_dim)

    out = label_encoder_forward(ids, params, block_b=512)
    out = jax.block_until_ready(out)

    ref_bf16 = reference_forward_bf16(ids, params)
    ref_f32 = reference_forward_f32(ids, params)

    assert out.shape == (batch, embedding_dim), out.shape
    assert jnp.allclose(out, ref_bf16, atol=2e-3, rtol=2e-3), "mismatch vs bf16-matched reference"
    assert jnp.allclose(out, ref_f32, atol=5e-2, rtol=5e-2), "mismatch vs f32 reference"

    print("KERNEL_OK")
</pallas_src>

<mosaic_0001>
module attributes {stable_mosaic.version = 11 : i64} {
  func.func @label_encoder_kernel(%arg0: i32, %arg1: memref<8x1xi32, #tpu.memory_space<vmem>>, %arg2: memref<128x128xbf16, #tpu.memory_space<vmem>>, %arg3: memref<1x128xf32, #tpu.memory_space<vmem>>, %arg4: memref<128x128xbf16, #tpu.memory_space<vmem>>, %arg5: memref<1x128xf32, #tpu.memory_space<vmem>>, %arg6: memref<128x128xbf16, #tpu.memory_space<vmem>>, %arg7: memref<1x128xf32, #tpu.memory_space<vmem>>, %arg8: memref<8x128xf32, #tpu.memory_space<vmem>>) attributes {dimension_semantics = [#tpu.dimension_semantics<parallel>], iteration_bounds = array<i64: 2>, scalar_prefetch = 0 : i64, scratch_operands = 0 : i64, tpu.core_type = #tpu.core_type<tc>, window_params = [{transform_indices = @transform_0, window_bounds = array<i64: 8, 1>}, {pipeline_mode = #tpu.pipeline_mode<synchronous>, transform_indices = @transform_1, window_bounds = array<i64: 128, 128>}, {pipeline_mode = #tpu.pipeline_mode<synchronous>, transform_indices = @transform_2, window_bounds = array<i64: 1, 128>}, {pipeline_mode = #tpu.pipeline_mode<synchronous>, transform_indices = @transform_3, window_bounds = array<i64: 128, 128>}, {pipeline_mode = #tpu.pipeline_mode<synchronous>, transform_indices = @transform_4, window_bounds = array<i64: 1, 128>}, {pipeline_mode = #tpu.pipeline_mode<synchronous>, transform_indices = @transform_5, window_bounds = array<i64: 128, 128>}, {pipeline_mode = #tpu.pipeline_mode<synchronous>, transform_indices = @transform_6, window_bounds = array<i64: 1, 128>}, {transform_indices = @transform_7, window_bounds = array<i64: 8, 128>}]} {
    %c0 = arith.constant 0 : index
    %c0_0 = arith.constant 0 : index
    %0 = vector.load %arg1[%c0, %c0_0] : memref<8x1xi32, #tpu.memory_space<vmem>>, vector<8x1xi32>
    %1 = tpu.iota {dimensions = array<i32: 1>} : vector<8x128xi32>
    %2 = vector.broadcast %0 : vector<8x1xi32> to vector<8x128xi32>
    %3 = arith.cmpi eq, %1, %2 : vector<8x128xi32>
    %4 = arith.extui %3 : vector<8x128xi1> to vector<8x128xi32>
    %5 = arith.sitofp %4 : vector<8x128xi32> to vector<8x128xf32>
    %6 = arith.truncf %5 : vector<8x128xf32> to vector<8x128xbf16>
    %c0_1 = arith.constant 0 : index
    %c0_2 = arith.constant 0 : index
    %7 = vector.load %arg2[%c0_1, %c0_2] : memref<128x128xbf16, #tpu.memory_space<vmem>>, vector<128x128xbf16>
    %cst = arith.constant dense<0.000000e+00> : vector<8x128xf32>
    %8 = tpu.matmul %6, %7, %cst {dimension_numbers = #tpu.dot_dimension_numbers<[1], [0], [0], [1], [0, 0, 1, 1], [], []>} : vector<8x128xbf16>, vector<128x128xbf16>, vector<8x128xf32> -> vector<8x128xf32>
    %c0_3 = arith.constant 0 : index
    %c0_4 = arith.constant 0 : index
    %9 = vector.load %arg3[%c0_3, %c0_4] : memref<1x128xf32, #tpu.memory_space<vmem>>, vector<1x128xf32>
    %10 = vector.broadcast %9 : vector<1x128xf32> to vector<8x128xf32>
    %11 = arith.addf %8, %10 : vector<8x128xf32>
    %cst_5 = arith.constant 0.000000e+00 : f32
    %12 = vector.broadcast %cst_5 : f32 to vector<8x128xf32>
    %13 = arith.maximumf %11, %12 : vector<8x128xf32>
    %14 = arith.truncf %13 : vector<8x128xf32> to vector<8x128xbf16>
    %c0_6 = arith.constant 0 : index
    %c0_7 = arith.constant 0 : index
    %15 = vector.load %arg4[%c0_6, %c0_7] : memref<128x128xbf16, #tpu.memory_space<vmem>>, vector<128x128xbf16>
    %cst_8 = arith.constant dense<0.000000e+00> : vector<8x128xf32>
    %16 = tpu.matmul %14, %15, %cst_8 {dimension_numbers = #tpu.dot_dimension_numbers<[1], [0], [0], [1], [0, 0, 1, 1], [], []>} : vector<8x128xbf16>, vector<128x128xbf16>, vector<8x128xf32> -> vector<8x128xf32>
    %c0_9 = arith.constant 0 : index
    %c0_10 = arith.constant 0 : index
    %17 = vector.load %arg5[%c0_9, %c0_10] : memref<1x128xf32, #tpu.memory_space<vmem>>, vector<1x128xf32>
    %18 = vector.broadcast %17 : vector<1x128xf32> to vector<8x128xf32>
    %19 = arith.addf %16, %18 : vector<8x128xf32>
    %cst_11 = arith.constant 0.000000e+00 : f32
    %20 = vector.broadcast %cst_11 : f32 to vector<8x128xf32>
    %21 = arith.maximumf %19, %20 : vector<8x128xf32>
    %22 = arith.truncf %21 : vector<8x128xf32> to vector<8x128xbf16>
    %c0_12 = arith.constant 0 : index
    %c0_13 = arith.constant 0 : index
    %23 = vector.load %arg6[%c0_12, %c0_13] : memref<128x128xbf16, #tpu.memory_space<vmem>>, vector<128x128xbf16>
    %cst_14 = arith.constant dense<0.000000e+00> : vector<8x128xf32>
    %24 = tpu.matmul %22, %23, %cst_14 {dimension_numbers = #tpu.dot_dimension_numbers<[1], [0], [0], [1], [0, 0, 1, 1], [], []>} : vector<8x128xbf16>, vector<128x128xbf16>, vector<8x128xf32> -> vector<8x128xf32>
    %c0_15 = arith.constant 0 : index
    %c0_16 = arith.constant 0 : index
    %25 = vector.load %arg7[%c0_15, %c0_16] : memref<1x128xf32, #tpu.memory_space<vmem>>, vector<1x128xf32>
    %26 = vector.broadcast %25 : vector<1x128xf32> to vector<8x128xf32>
    %27 = arith.addf %24, %26 : vector<8x128xf32>
    %c0_17 = arith.constant 0 : index
    %c0_18 = arith.constant 0 : index
    %28 = vector.load %arg8[%c0_17, %c0_18] : memref<8x128xf32, #tpu.memory_space<vmem>>, vector<8x128xf32>
    tpu.vector_store %arg8[%c0_17, %c0_18], %27 {strides = array<i32>} : memref<8x128xf32, #tpu.memory_space<vmem>>, vector<8x128xf32>,
    return
  }
  func.func @transform_0(%arg0: i32) -> (i32, i32) {
    %c0_i32 = arith.constant 0 : i32
    %c0_i32_0 = arith.constant 0 : i32
    return %arg0, %c0_i32 : i32, i32
  }
  func.func @transform_1(%arg0: i32) -> (i32, i32) {
    %c0_i32 = arith.constant 0 : i32
    %c0_i32_0 = arith.constant 0 : i32
    %c0_i32_1 = arith.constant 0 : i32
    return %c0_i32, %c0_i32_0 : i32, i32
  }
  func.func @transform_2(%arg0: i32) -> (i32, i32) {
    %c0_i32 = arith.constant 0 : i32
    %c0_i32_0 = arith.constant 0 : i32
    %c0_i32_1 = arith.constant 0 : i32
    return %c0_i32, %c0_i32_0 : i32, i32
  }
  func.func @transform_3(%arg0: i32) -> (i32, i32) {
    %c0_i32 = arith.constant 0 : i32
    %c0_i32_0 = arith.constant 0 : i32
    %c0_i32_1 = arith.constant 0 : i32
    return %c0_i32, %c0_i32_0 : i32, i32
  }
  func.func @transform_4(%arg0: i32) -> (i32, i32) {
    %c0_i32 = arith.constant 0 : i32
    %c0_i32_0 = arith.constant 0 : i32
    %c0_i32_1 = arith.constant 0 : i32
    return %c0_i32, %c0_i32_0 : i32, i32
  }
  func.func @transform_5(%arg0: i32) -> (i32, i32) {
    %c0_i32 = arith.constant 0 : i32
    %c0_i32_0 = arith.constant 0 : i32
    %c0_i32_1 = arith.constant 0 : i32
    return %c0_i32, %c0_i32_0 : i32, i32
  }
  func.func @transform_6(%arg0: i32) -> (i32, i32) {
    %c0_i32 = arith.constant 0 : i32
    %c0_i32_0 = arith.constant 0 : i32
    %c0_i32_1 = arith.constant 0 : i32
    return %c0_i32, %c0_i32_0 : i32, i32
  }
  func.func @transform_7(%arg0: i32) -> (i32, i32) {
    %c0_i32 = arith.constant 0 : i32
    %c0_i32_0 = arith.constant 0 : i32
    return %arg0, %c0_i32 : i32, i32
  }
}

</mosaic_0001>

<llo_original>
// kernel: label_encoder_forward.1
$region0: #{label_encoder_forward.1}
  #allocation0 [shape = 'u32[]', space=smem, size = 0x4, offset = 0x4, fixed_abs, tag = 'smem constant byte address 0x4 - core index']
  #allocation1 [shape = 'u32[144,128]{1,0:T(1,128)}', space=vmem, size = 0x12000, scoped, tag = 'internal scratch']
  %s0 = inlined_call_operand.vmem [shape: s32[16,1], index: 0, kind: input, shape index: {}]
  %s1 = inlined_call_operand.vmem [shape: bf16[128,128], index: 1, kind: input, shape index: {}]
  %s2 = inlined_call_operand.vmem [shape: f32[1,128], index: 2, kind: input, shape index: {}]
  %s3 = inlined_call_operand.vmem [shape: bf16[128,128], index: 3, kind: input, shape index: {}]
  %s4 = inlined_call_operand.vmem [shape: f32[1,128], index: 4, kind: input, shape index: {}]
  %s5 = inlined_call_operand.vmem [shape: bf16[128,128], index: 5, kind: input, shape index: {}]
  %s6 = inlined_call_operand.vmem [shape: f32[1,128], index: 6, kind: input, shape index: {}]
  %s7 = inlined_call_operand.hbm [shape: f32[16,128], index: 7, kind: output, shape index: {}]
  %s8 = sld [smem:[#allocation0]]
  $region61: #{label_encoder_forward.1} parent=0
    _
  %s10 = ssub.s32 1, %s8
  %s11 = scalar_select 0, %s10, %s8
  $region1: #{label_encoder_forward.1} parent=0
    #allocation2 [shape = 'u8[8192]{0}', space=vmem, size = 0x2000, scoped, tag = 'output window, operand 0']
    #allocation3 [shape = 's32[2]{0}', space=sflag, size = 0x8, scoped, tag = 'scoped memory for label_encoder_forward.1']
    %12 = vsyncpa [#allocation3], 0
    %s13 = scalar_lea.sflag [#allocation3], 1
    %14 = vsyncpa %s13, 0
    loop: start=0, step=1, limit=4
    $region2: #{label_encoder_forward.1} parent=1 // loop_pre_header
      _
    $region3: #{label_encoder_forward.1} parent=1 // loop_header
      %s16 = sphi 0, %s20
      %p17 = scmp.ge.s32.totalorder %s16, 4
      %s26 = sphi 0, %s28
      %s29 = sphi 0, %s26
      %s30 = sphi 0, %s29
      %s46 = sphi 0, %s30
      %s50 = sphi 0, %s50
      %s52 = sphi 0, %s50
      %s53 = sphi 0, %s52
      %s67 = sphi 0, %s53
      %s71 = sphi 0, %s71
      %s73 = sphi 0, %s71
      %s74 = sphi 0, %s73
      %s88 = sphi 0, %s74
      %s92 = sphi 0, %s92
      %s94 = sphi 0, %s92
      %s95 = sphi 0, %s94
      %s109 = sphi 0, %s95
      %s113 = sphi 0, %s113
      %s115 = sphi 0, %s113
      %s116 = sphi 0, %s115
      %s130 = sphi 0, %s116
      %s134 = sphi 0, %s134
      %s136 = sphi 0, %s134
      %s137 = sphi 0, %s136
      %s151 = sphi 0, %s137
      %s155 = sphi 0, %s155
      %s157 = sphi 0, %s155
      %s158 = sphi 0, %s157
      %s172 = sphi 0, %s158
      %s178 = sphi 0, %s180
      %s181 = sphi 0, %s178
      %s182 = sphi 0, %s181
      %s198 = sphi 0, %s182
    $region4: #{label_encoder_forward.1} parent=1 // loop_header_branch
      %19 = sbr.rel (%p17) target = $region8
    $region5: #{label_encoder_forward.1} parent=1 // loop_body
      %s21 = ssub.s32 %s16, 1
      %s22 = ssub.s32 %s16, 2
      %s23 = sadd.s32 %s16, 1
      %s24 = ssub.s32 %s16, %s23
      %p25 = scmp.eq.s32.totalorder %s24, 0
      %s27 = sadd.s32 %s26, 1
      %s28 = scalar_select %p25, %s26, %s27
      %p31 = pneg %p25
      %p32 = scmp.eq.s32.totalorder %s16, 1
      %p33 = por %p31, %p32
      %p34 = scmp.ne.s32.totalorder %s26, %s29
      %p35 = scmp.eq.s32.totalorder %s16, 0
      %p36 = por %p34, %p35
      %p37 = scmp.ne.s32.totalorder %s26, %s29
      %p38 = scmp.eq.s32.totalorder %s21, 1
      %p39 = por %p37, %p38
      %p40 = scmp.ne.s32.totalorder %s29, %s30
      %p41 = scmp.eq.s32.totalorder %s21, 0
      %p42 = por %p40, %p41
      %p43 = scmp.ne.s32.totalorder %s29, %s30
      %p44 = scmp.eq.s32.totalorder %s22, 1
      %p45 = por %p43, %p44
      %p47 = scmp.ne.s32.totalorder %s30, %s46
      %p48 = scmp.eq.s32.totalorder %s22, 0
      %p49 = por %p47, %p48
      %s51 = sadd.s32 %s50, 1
      %p54 = scmp.eq.s32.totalorder %s16, 1
      %p55 = scmp.ne.s32.totalorder %s50, %s52
      %p56 = scmp.eq.s32.totalorder %s16, 0
      %p57 = por %p55, %p56
      %p58 = scmp.ne.s32.totalorder %s50, %s52
      %p59 = scmp.eq.s32.totalorder %s21, 1
      %p60 = por %p58, %p59
      %p61 = scmp.ne.s32.totalorder %s52, %s53
      %p62 = scmp.eq.s32.totalorder %s21, 0
      %p63 = por %p61, %p62
      %p64 = scmp.ne.s32.totalorder %s52, %s53
      %p65 = scmp.eq.s32.totalorder %s22, 1
      %p66 = por %p64, %p65
      %p68 = scmp.ne.s32.totalorder %s53, %s67
      %p69 = scmp.eq.s32.totalorder %s22, 0
      %p70 = por %p68, %p69
      %s72 = sadd.s32 %s71, 1
      %p75 = scmp.eq.s32.totalorder %s16, 1
      %p76 = scmp.ne.s32.totalorder %s71, %s73
      %p77 = scmp.eq.s32.totalorder %s16, 0
      %p78 = por %p76, %p77
      %p79 = scmp.ne.s32.totalorder %s71, %s73
      %p80 = scmp.eq.s32.totalorder %s21, 1
      %p81 = por %p79, %p80
      %p82 = scmp.ne.s32.totalorder %s73, %s74
      %p83 = scmp.eq.s32.totalorder %s21, 0
      %p84 = por %p82, %p83
      %p85 = scmp.ne.s32.totalorder %s73, %s74
      %p86 = scmp.eq.s32.totalorder %s22, 1
      %p87 = por %p85, %p86
      %p89 = scmp.ne.s32.totalorder %s74, %s88
      %p90 = scmp.eq.s32.totalorder %s22, 0
      %p91 = por %p89, %p90
      %s93 = sadd.s32 %s92, 1
      %p96 = scmp.eq.s32.totalorder %s16, 1
      %p97 = scmp.ne.s32.totalorder %s92, %s94
      %p98 = scmp.eq.s32.totalorder %s16, 0
      %p99 = por %p97, %p98
      %p100 = scmp.ne.s32.totalorder %s92, %s94
      %p101 = scmp.eq.s32.totalorder %s21, 1
      %p102 = por %p100, %p101
      %p103 = scmp.ne.s32.totalorder %s94, %s95
      %p104 = scmp.eq.s32.totalorder %s21, 0
      %p105 = por %p103, %p104
      %p106 = scmp.ne.s32.totalorder %s94, %s95
      %p107 = scmp.eq.s32.totalorder %s22, 1
      %p108 = por %p106, %p107
      %p110 = scmp.ne.s32.totalorder %s95, %s109
      %p111 = scmp.eq.s32.totalorder %s22, 0
      %p112 = por %p110, %p111
      %s114 = sadd.s32 %s113, 1
      %p117 = scmp.eq.s32.totalorder %s16, 1
      %p118 = scmp.ne.s32.totalorder %s113, %s115
      %p119 = scmp.eq.s32.totalorder %s16, 0
      %p120 = por %p118, %p119
      %p121 = scmp.ne.s32.totalorder %s113, %s115
      %p122 = scmp.eq.s32.totalorder %s21, 1
      %p123 = por %p121, %p122
      %p124 = scmp.ne.s32.totalorder %s115, %s116
      %p125 = scmp.eq.s32.totalorder %s21, 0
      %p126 = por %p124, %p125
      %p127 = scmp.ne.s32.totalorder %s115, %s116
      %p128 = scmp.eq.s32.totalorder %s22, 1
      %p129 = por %p127, %p128
      %p131 = scmp.ne.s32.totalorder %s116, %s130
      %p132 = scmp.eq.s32.totalorder %s22, 0
      %p133 = por %p131, %p132
      %s135 = sadd.s32 %s134, 1
      %p138 = scmp.eq.s32.totalorder %s16, 1
      %p139 = scmp.ne.s32.totalorder %s134, %s136
      %p140 = scmp.eq.s32.totalorder %s16, 0
      %p141 = por %p139, %p140
      %p142 = scmp.ne.s32.totalorder %s134, %s136
      %p143 = scmp.eq.s32.totalorder %s21, 1
      %p144 = por %p142, %p143
      %p145 = scmp.ne.s32.totalorder %s136, %s137
      %p146 = scmp.eq.s32.totalorder %s21, 0
      %p147 = por %p145, %p146
      %p148 = scmp.ne.s32.totalorder %s136, %s137
      %p149 = scmp.eq.s32.totalorder %s22, 1
      %p150 = por %p148, %p149
      %p152 = scmp.ne.s32.totalorder %s137, %s151
      %p153 = scmp.eq.s32.totalorder %s22, 0
      %p154 = por %p152, %p153
      %s156 = sadd.s32 %s155, 1
      %p159 = scmp.eq.s32.totalorder %s16, 1
      %p160 = scmp.ne.s32.totalorder %s155, %s157
      %p161 = scmp.eq.s32.totalorder %s16, 0
      %p162 = por %p160, %p161
      %p163 = scmp.ne.s32.totalorder %s155, %s157
      %p164 = scmp.eq.s32.totalorder %s21, 1
      %p165 = por %p163, %p164
      %p166 = scmp.ne.s32.totalorder %s157, %s158
      %p167 = scmp.eq.s32.totalorder %s21, 0
      %p168 = por %p166, %p167
      %p169 = scmp.ne.s32.totalorder %s157, %s158
      %p170 = scmp.eq.s32.totalorder %s22, 1
      %p171 = por %p169, %p170
      %p173 = scmp.ne.s32.totalorder %s158, %s172
      %p174 = scmp.eq.s32.totalorder %s22, 0
      %p175 = por %p173, %p174
      %s176 = ssub.s32 %s16, %s23
      %p177 = scmp.eq.s32.totalorder %s176, 0
      %s179 = sadd.s32 %s178, 1
      %s180 = scalar_select %p177, %s178, %s179
      %p183 = pneg %p177
      %p184 = scmp.eq.s32.totalorder %s16, 1
      %p185 = por %p183, %p184
      %p186 = scmp.ne.s32.totalorder %s178, %s181
      %p187 = scmp.eq.s32.totalorder %s16, 0
      %p188 = por %p186, %p187
      %p189 = scmp.ne.s32.totalorder %s178, %s181
      %p190 = scmp.eq.s32.totalorder %s21, 1
      %p191 = por %p189, %p190
      %p192 = scmp.ne.s32.totalorder %s181, %s182
      %p193 = scmp.eq.s32.totalorder %s21, 0
      %p194 = por %p192, %p193
      %p195 = scmp.ne.s32.totalorder %s181, %s182
      %p196 = scmp.eq.s32.totalorder %s22, 1
      %p197 = por %p195, %p196
      %p199 = scmp.ne.s32.totalorder %s182, %s198
      %p200 = scmp.eq.s32.totalorder %s22, 0
      %p201 = por %p199, %p200
      %p202 = scmp.le.s32.totalorder 1, %s16
      %p203 = scmp.lt.s32.totalorder %s16, 3
      %p204 = pnand %p202, %p203
      %p205 = pneg %p204
      // Predicated region
      $region9: #{label_encoder_forward.1} parent=5 // pred_check
        _
      $region10: #{label_encoder_forward.1} parent=5 // pred_check_branch
        %207 = sbr.rel (%p204) target = $region12
      $region11: #{label_encoder_forward.1} parent=5 // pred_region
        %s208 = ssub.s32 %s16, 1
        // Predicated region
        $region13: #{label_encoder_forward.1} parent=11 // pred_check
          %p209 = pneg %p63
        $region14: #{label_encoder_forward.1} parent=11 // pred_check_branch
          %211 = sbr.rel (%p209) target = $region16
        $region15: #{label_encoder_forward.1} parent=11 // pred_region
          _
        $region16: #{label_encoder_forward.1} parent=11 // pred_fallthru
          _
        // Predicated region
        $region17: #{label_encoder_forward.1} parent=11 // pred_check
          %p212 = pneg %p84
        $region18: #{label_encoder_forward.1} parent=11 // pred_check_branch
          %214 = sbr.rel (%p212) target = $region20
        $region19: #{label_encoder_forward.1} parent=11 // pred_region
          _
        $region20: #{label_encoder_forward.1} parent=11 // pred_fallthru
          _
        // Predicated region
        $region21: #{label_encoder_forward.1} parent=11 // pred_check
          %p215 = pneg %p105
        $region22: #{label_encoder_forward.1} parent=11 // pred_check_branch
          %217 = sbr.rel (%p215) target = $region24
        $region23: #{label_encoder_forward.1} parent=11 // pred_region
          _
        $region24: #{label_encoder_forward.1} parent=11 // pred_fallthru
          _
        // Predicated region
        $region25: #{label_encoder_forward.1} parent=11 // pred_check
          %p218 = pneg %p126
        $region26: #{label_encoder_forward.1} parent=11 // pred_check_branch
          %220 = sbr.rel (%p218) target = $region28
        $region27: #{label_encoder_forward.1} parent=11 // pred_region
          _
        $region28: #{label_encoder_forward.1} parent=11 // pred_fallthru
          _
        // Predicated region
        $region29: #{label_encoder_forward.1} parent=11 // pred_check
          %p221 = pneg %p147
        $region30: #{label_encoder_forward.1} parent=11 // pred_check_branch
          %223 = sbr.rel (%p221) target = $region32
        $region31: #{label_encoder_forward.1} parent=11 // pred_region
          _
        $region32: #{label_encoder_forward.1} parent=11 // pred_fallthru
          _
        // Predicated region
        $region33: #{label_encoder_forward.1} parent=11 // pred_check
          %p224 = pneg %p168
        $region34: #{label_encoder_forward.1} parent=11 // pred_check_branch
          %226 = sbr.rel (%p224) target = $region36
        $region35: #{label_encoder_forward.1} parent=11 // pred_region
          _
        $region36: #{label_encoder_forward.1} parent=11 // pred_fallthru
          _
      $region12: #{label_encoder_forward.1} parent=5 // pred_fallthru
        _
      %p227 = scmp.lt.s32.totalorder %s16, 2
      // Predicated region
      $region37: #{label_encoder_forward.1} parent=5 // pred_check
        %p228 = pneg %p227
      $region38: #{label_encoder_forward.1} parent=5 // pred_check_branch
        %230 = sbr.rel (%p228) target = $region40
      $region39: #{label_encoder_forward.1} parent=5 // pred_region
        // Predicated region
        $region41: #{label_encoder_forward.1} parent=39 // pred_check
          %p231 = pneg %p36
        $region42: #{label_encoder_forward.1} parent=39 // pred_check_branch
          %233 = sbr.rel (%p231) target = $region44
        $region43: #{label_encoder_forward.1} parent=39 // pred_region
          %p234 = scmp.lt.s32.totalorder %s16, 1
          %s235 = scalar_select %p234, %s16, 1
          %s236 = smul.addr %s235, 8
          %s237 = scalar_lea.vmem %s0, %s236
        $region44: #{label_encoder_forward.1} parent=39 // pred_fallthru
          _
      $region40: #{label_encoder_forward.1} parent=5 // pred_fallthru
        _
      %p238 = scmp.le.s32.totalorder 1, %s16
      %p239 = scmp.lt.s32.totalorder %s16, 3
      %p240 = pnand %p238, %p239
      %p241 = pneg %p240
      // Predicated region
      $region45: #{label_encoder_forward.1} parent=5 // pred_check
        _
      $region46: #{label_encoder_forward.1} parent=5 // pred_check_branch
        %243 = sbr.rel (%p240) target = $region48
      $region47: #{label_encoder_forward.1} parent=5 // pred_region
        %s244 = ssub.s32 %s16, 1
        %p245 = scmp.lt.s32.totalorder %s21, 1
        %s246 = scalar_select %p245, %s21, 1
        %s247 = smul.addr %s246, 8
        %s248 = scalar_lea.vmem %s0, %s247
        %p249 = pneg %p42
        %p250 = pneg %p39
        %p251 = pneg %p63
        %p252 = pneg %p60
        %p253 = pneg %p84
        %p254 = pneg %p81
        %p255 = pneg %p105
        %p256 = pneg %p102
        %p257 = pneg %p126
        %p258 = pneg %p123
        %p259 = pneg %p147
        %p260 = pneg %p144
        %p261 = pneg %p168
        %p262 = pneg %p165
        %p263 = pneg %p194
        %p264 = pneg %p191
        %s265 = sand.u32 %s181, 1
        %s266 = scalar_lea.sflag [#allocation3], %s265
        %s267 = sand.u32 %s181, 1
        %s268 = smul.addr %s267, 8
        %s269 = scalar_lea.vmem [#allocation2], %s268
        %p270 = scmp.lt.s32.totalorder %s21, 1
        %s271 = scalar_select %p270, %s21, 1
        %s272 = smul.addr %s271, 8
        %s273 = scalar_lea.vmem %s0, %s272
        %v275 = vld [vmem:[%s273] sm:$0xff]
        %v276 = vlaneseq
        %v277 = vand.u32 %v276, 127
        %278 = vset.pattern.permute.xlu0 0
        %279 = vperm.xlu0 %278, %v275
        %v280 = vpop.permute.xlu0 %279
        %vm281 = vcmp.eq.s32.totalorder %v277, %v280
        %v282 = vsel %vm281, 1, 0
        %v283 = vcvt.s32.f32 %v282
        %v284 = vpack.c.bf16 %v283, %v283
        %v285 = vld [vmem:[%s1] sm:$0xf]
        %v286 = vld [vmem:[%s1 + $0x4] sm:$0xf]
        %v287 = vld [vmem:[%s1 + $0x8] sm:$0xf]
        %v288 = vld [vmem:[%s1 + $0xc] sm:$0xf]
        %v289 = vld [vmem:[%s1 + $0x10] sm:$0xf]
        %v290 = vld [vmem:[%s1 + $0x14] sm:$0xf]
        %v291 = vld [vmem:[%s1 + $0x18] sm:$0xf]
        %v292 = vld [vmem:[%s1 + $0x1c] sm:$0xf]
        %v293 = vld [vmem:[%s1 + $0x20] sm:$0xf]
        %v294 = vld [vmem:[%s1 + $0x24] sm:$0xf]
        %v295 = vld [vmem:[%s1 + $0x28] sm:$0xf]
        %v296 = vld [vmem:[%s1 + $0x2c] sm:$0xf]
        %v297 = vld [vmem:[%s1 + $0x30] sm:$0xf]
        %v298 = vld [vmem:[%s1 + $0x34] sm:$0xf]
        %v299 = vld [vmem:[%s1 + $0x38] sm:$0xf]
        %v300 = vld [vmem:[%s1 + $0x3c] sm:$0xf]
        %v301 = vld [vmem:[%s2] sm:$0x1]
        %v303 = vlaneseq
        %v304 = vshrl.u32 %v303, 7
        %v305 = vsub.s32 0, %v304
        %v306 = vrot.slane %v301, %v305
        %v324 = vunpack.c.l.b16 %v285
        %v325 = vunpack.c.l.b16 %v286
        %v326 = vunpack.c.l.b16 %v287
        %v327 = vunpack.c.l.b16 %v288
        %v328 = vunpack.c.l.b16 %v289
        %v329 = vunpack.c.l.b16 %v290
        %v330 = vunpack.c.l.b16 %v291
        %v331 = vunpack.c.l.b16 %v292
        %v332 = vunpack.c.l.b16 %v293
        %v333 = vunpack.c.l.b16 %v294
        %v334 = vunpack.c.l.b16 %v295
        %v335 = vunpack.c.l.b16 %v296
        %v336 = vunpack.c.l.b16 %v297
        %v337 = vunpack.c.l.b16 %v298
        %v338 = vunpack.c.l.b16 %v299
        %v339 = vunpack.c.l.b16 %v300
        %v340 = vpack.c.b16 %v325, %v324
        %v341 = vpack.c.b16 %v327, %v326
        %v342 = vpack.c.b16 %v329, %v328
        %v343 = vpack.c.b16 %v331, %v330
        %v344 = vpack.c.b16 %v333, %v332
        %v345 = vpack.c.b16 %v335, %v334
        %v346 = vpack.c.b16 %v337, %v336
        %v347 = vpack.c.b16 %v339, %v338
        %356 = vmatprep.subr.bf16.mxu0 0
        %357 = vmatpush1.bf16.msra.mxu0 %v347
        %358 = vmatprep.subr.bf16.mxu0 0
        %359 = vmatpush1.bf16.msra.mxu0 %v346
        %360 = vmatprep.subr.bf16.mxu0 0
        %361 = vmatpush1.bf16.msra.mxu0 %v345
        %362 = vmatprep.subr.bf16.mxu0 0
        %363 = vmatpush1.bf16.msra.mxu0 %v344
        %364 = vmatprep.subr.bf16.mxu0 0
        %365 = vmatpush1.bf16.msra.mxu0 %v343
        %366 = vmatprep.subr.bf16.mxu0 0
        %367 = vmatpush1.bf16.msra.mxu0 %v342
        %368 = vmatprep.subr.bf16.mxu0 0
        %369 = vmatpush1.bf16.msra.mxu0 %v341
        %370 = vmatprep.subr.bf16.mxu0 0
        %371 = vmatpush1.bf16.msra.mxu0 %v340
        %372 = vmatprep.subr.bf16.mxu0 0
        %373 = vmatpush2.bf16.msra.mxu0 0
        %374 = vmatprep.subr.bf16.mxu0 0
        %375 = vmatpush2.bf16.msra.mxu0 0
        %376 = vmatprep.subr.bf16.mxu0 0
        %377 = vmatpush2.bf16.msra.mxu0 0
        %378 = vmatprep.subr.bf16.mxu0 0
        %379 = vmatpush2.bf16.msra.mxu0 0
        %380 = vmatprep.subr.bf16.mxu0 0
        %381 = vmatpush2.bf16.msra.mxu0 0
        %382 = vmatprep.subr.bf16.mxu0 0
        %383 = vmatpush2.bf16.msra.mxu0 0
        %384 = vmatprep.subr.bf16.mxu0 0
        %385 = vmatpush2.bf16.msra.mxu0 0
        %386 = vmatprep.subr.bf16.mxu0 0
        %387 = vmatpush2.bf16.msra.mxu0 0
        %388 = vmatprep.mubr.bf16.mxu0 0
        %389 = vmatmul.mubr.bf16.gmra.mxu0 %v284
        %v390 = vpop.f32.mrf.mxu0
        %v391 = vadd.f32 %v306, %v390
        %v392 = vpop.f32.mrf.mxu0
        %v393 = vpop.f32.mrf.mxu0
        %v394 = vpop.f32.mrf.mxu0
        %395 = vdwg.mxu0
        %v396 = vmax.f32 %v391, 0.0
        %v397 = vpack.c.bf16 %v396, %v396
        %v398 = vld [vmem:[%s3] sm:$0xf]
        %v399 = vld [vmem:[%s3 + $0x4] sm:$0xf]
        %v400 = vld [vmem:[%s3 + $0x8] sm:$0xf]
        %v401 = vld [vmem:[%s3 + $0xc] sm:$0xf]
        %v402 = vld [vmem:[%s3 + $0x10] sm:$0xf]
        %v403 = vld [vmem:[%s3 + $0x14] sm:$0xf]
        %v404 = vld [vmem:[%s3 + $0x18] sm:$0xf]
        %v405 = vld [vmem:[%s3 + $0x1c] sm:$0xf]
        %v406 = vld [vmem:[%s3 + $0x20] sm:$0xf]
        %v407 = vld [vmem:[%s3 + $0x24] sm:$0xf]
        %v408 = vld [vmem:[%s3 + $0x28] sm:$0xf]
        %v409 = vld [vmem:[%s3 + $0x2c] sm:$0xf]
        %v410 = vld [vmem:[%s3 + $0x30] sm:$0xf]
        %v411 = vld [vmem:[%s3 + $0x34] sm:$0xf]
        %v412 = vld [vmem:[%s3 + $0x38] sm:$0xf]
        %v413 = vld [vmem:[%s3 + $0x3c] sm:$0xf]
        %v414 = vld [vmem:[%s4] sm:$0x1]
        %v416 = vlaneseq
        %v417 = vshrl.u32 %v416, 7
        %v418 = vsub.s32 0, %v417
        %v419 = vrot.slane %v414, %v418
        %v437 = vunpack.c.l.b16 %v398
        %v438 = vunpack.c.l.b16 %v399
        %v439 = vunpack.c.l.b16 %v400
        %v440 = vunpack.c.l.b16 %v401
        %v441 = vunpack.c.l.b16 %v402
        %v442 = vunpack.c.l.b16 %v403
        %v443 = vunpack.c.l.b16 %v404
        %v444 = vunpack.c.l.b16 %v405
        %v445 = vunpack.c.l.b16 %v406
        %v446 = vunpack.c.l.b16 %v407
        %v447 = vunpack.c.l.b16 %v408
        %v448 = vunpack.c.l.b16 %v409
        %v449 = vunpack.c.l.b16 %v410
        %v450 = vunpack.c.l.b16 %v411
        %v451 = vunpack.c.l.b16 %v412
        %v452 = vunpack.c.l.b16 %v413
        %v453 = vpack.c.b16 %v438, %v437
        %v454 = vpack.c.b16 %v440, %v439
        %v455 = vpack.c.b16 %v442, %v441
        %v456 = vpack.c.b16 %v444, %v443
        %v457 = vpack.c.b16 %v446, %v445
        %v458 = vpack.c.b16 %v448, %v447
        %v459 = vpack.c.b16 %v450, %v449
        %v460 = vpack.c.b16 %v452, %v451
        %469 = vmatprep.subr.bf16.mxu0 0
        %470 = vmatpush1.bf16.msra.mxu0 %v460
        %471 = vmatprep.subr.bf16.mxu0 0
        %472 = vmatpush1.bf16.msra.mxu0 %v459
        %473 = vmatprep.subr.bf16.mxu0 0
        %474 = vmatpush1.bf16.msra.mxu0 %v458
        %475 = vmatprep.subr.bf16.mxu0 0
        %476 = vmatpush1.bf16.msra.mxu0 %v457
        %477 = vmatprep.subr.bf16.mxu0 0
        %478 = vmatpush1.bf16.msra.mxu0 %v456
        %479 = vmatprep.subr.bf16.mxu0 0
        %480 = vmatpush1.bf16.msra.mxu0 %v455
        %481 = vmatprep.subr.bf16.mxu0 0
        %482 = vmatpush1.bf16.msra.mxu0 %v454
        %483 = vmatprep.subr.bf16.mxu0 0
        %484 = vmatpush1.bf16.msra.mxu0 %v453
        %485 = vmatprep.subr.bf16.mxu0 0
        %486 = vmatpush2.bf16.msra.mxu0 0
        %487 = vmatprep.subr.bf16.mxu0 0
        %488 = vmatpush2.bf16.msra.mxu0 0
        %489 = vmatprep.subr.bf16.mxu0 0
        %490 = vmatpush2.bf16.msra.mxu0 0
        %491 = vmatprep.subr.bf16.mxu0 0
        %492 = vmatpush2.bf16.msra.mxu0 0
        %493 = vmatprep.subr.bf16.mxu0 0
        %494 = vmatpush2.bf16.msra.mxu0 0
        %495 = vmatprep.subr.bf16.mxu0 0
        %496 = vmatpush2.bf16.msra.mxu0 0
        %497 = vmatprep.subr.bf16.mxu0 0
        %498 = vmatpush2.bf16.msra.mxu0 0
        %499 = vmatprep.subr.bf16.mxu0 0
        %500 = vmatpush2.bf16.msra.mxu0 0
        %501 = vmatprep.mubr.bf16.mxu0 0
        %502 = vmatmul.mubr.bf16.gmra.mxu0 %v397
        %v503 = vpop.f32.mrf.mxu0
        %v504 = vadd.f32 %v419, %v503
        %v505 = vpop.f32.mrf.mxu0
        %v506 = vpop.f32.mrf.mxu0
        %v507 = vpop.f32.mrf.mxu0
        %508 = vdwg.mxu0
        %v509 = vmax.f32 %v504, 0.0
        %v510 = vpack.c.bf16 %v509, %v509
        %v511 = vld [vmem:[%s5] sm:$0xf]
        %v512 = vld [vmem:[%s5 + $0x4] sm:$0xf]
        %v513 = vld [vmem:[%s5 + $0x8] sm:$0xf]
        %v514 = vld [vmem:[%s5 + $0xc] sm:$0xf]
        %v515 = vld [vmem:[%s5 + $0x10] sm:$0xf]
        %v516 = vld [vmem:[%s5 + $0x14] sm:$0xf]
        %v517 = vld [vmem:[%s5 + $0x18] sm:$0xf]
        %v518 = vld [vmem:[%s5 + $0x1c] sm:$0xf]
        %v519 = vld [vmem:[%s5 + $0x20] sm:$0xf]
        %v520 = vld [vmem:[%s5 + $0x24] sm:$0xf]
        %v521 = vld [vmem:[%s5 + $0x28] sm:$0xf]
        %v522 = vld [vmem:[%s5 + $0x2c] sm:$0xf]
        %v523 = vld [vmem:[%s5 + $0x30] sm:$0xf]
        %v524 = vld [vmem:[%s5 + $0x34] sm:$0xf]
        %v525 = vld [vmem:[%s5 + $0x38] sm:$0xf]
        %v526 = vld [vmem:[%s5 + $0x3c] sm:$0xf]
        %v527 = vld [vmem:[%s6] sm:$0x1]
        %v529 = vlaneseq
        %v530 = vshrl.u32 %v529, 7
        %v531 = vsub.s32 0, %v530
        %v532 = vrot.slane %v527, %v531
        %v550 = vunpack.c.l.b16 %v511
        %v551 = vunpack.c.l.b16 %v512
        %v552 = vunpack.c.l.b16 %v513
        %v553 = vunpack.c.l.b16 %v514
        %v554 = vunpack.c.l.b16 %v515
        %v555 = vunpack.c.l.b16 %v516
        %v556 = vunpack.c.l.b16 %v517
        %v557 = vunpack.c.l.b16 %v518
        %v558 = vunpack.c.l.b16 %v519
        %v559 = vunpack.c.l.b16 %v520
        %v560 = vunpack.c.l.b16 %v521
        %v561 = vunpack.c.l.b16 %v522
        %v562 = vunpack.c.l.b16 %v523
        %v563 = vunpack.c.l.b16 %v524
        %v564 = vunpack.c.l.b16 %v525
        %v565 = vunpack.c.l.b16 %v526
        %v566 = vpack.c.b16 %v551, %v550
        %v567 = vpack.c.b16 %v553, %v552
        %v568 = vpack.c.b16 %v555, %v554
        %v569 = vpack.c.b16 %v557, %v556
        %v570 = vpack.c.b16 %v559, %v558
        %v571 = vpack.c.b16 %v561, %v560
        %v572 = vpack.c.b16 %v563, %v562
        %v573 = vpack.c.b16 %v565, %v564
        %582 = vmatprep.subr.bf16.mxu0 0
        %583 = vmatpush1.bf16.msra.mxu0 %v573
        %584 = vmatprep.subr.bf16.mxu0 0
        %585 = vmatpush1.bf16.msra.mxu0 %v572
        %586 = vmatprep.subr.bf16.mxu0 0
        %587 = vmatpush1.bf16.msra.mxu0 %v571
        %588 = vmatprep.subr.bf16.mxu0 0
        %589 = vmatpush1.bf16.msra.mxu0 %v570
        %590 = vmatprep.subr.bf16.mxu0 0
        %591 = vmatpush1.bf16.msra.mxu0 %v569
        %592 = vmatprep.subr.bf16.mxu0 0
        %593 = vmatpush1.bf16.msra.mxu0 %v568
        %594 = vmatprep.subr.bf16.mxu0 0
        %595 = vmatpush1.bf16.msra.mxu0 %v567
        %596 = vmatprep.subr.bf16.mxu0 0
        %597 = vmatpush1.bf16.msra.mxu0 %v566
        %598 = vmatprep.subr.bf16.mxu0 0
        %599 = vmatpush2.bf16.msra.mxu0 0
        %600 = vmatprep.subr.bf16.mxu0 0
        %601 = vmatpush2.bf16.msra.mxu0 0
        %602 = vmatprep.subr.bf16.mxu0 0
        %603 = vmatpush2.bf16.msra.mxu0 0
        %604 = vmatprep.subr.bf16.mxu0 0
        %605 = vmatpush2.bf16.msra.mxu0 0
        %606 = vmatprep.subr.bf16.mxu0 0
        %607 = vmatpush2.bf16.msra.mxu0 0
        %608 = vmatprep.subr.bf16.mxu0 0
        %609 = vmatpush2.bf16.msra.mxu0 0
        %610 = vmatprep.subr.bf16.mxu0 0
        %611 = vmatpush2.bf16.msra.mxu0 0
        %612 = vmatprep.subr.bf16.mxu0 0
        %613 = vmatpush2.bf16.msra.mxu0 0
        %614 = vmatprep.mubr.bf16.mxu0 0
        %615 = vmatmul.mubr.bf16.gmra.mxu0 %v510
        %v616 = vpop.f32.mrf.mxu0
        %v617 = vadd.f32 %v532, %v616
        %v618 = vpop.f32.mrf.mxu0
        %v619 = vpop.f32.mrf.mxu0
        %v620 = vpop.f32.mrf.mxu0
        %621 = vdwg.mxu0
        %622 = vst [vmem:[%s269] sm:$0xff] %v617
        %s623 = sand.u32 %s181, 1
        %s624 = scalar_lea.sflag [#allocation3], %s623
        %s625 = sand.u32 %s181, 1
        %s626 = smul.addr %s625, 8
        %s627 = scalar_lea.vmem [#allocation2], %s626
        // Predicated region
        $region49: #{label_encoder_forward.1} parent=47 // pred_check
          %p628 = pneg %p191
        $region50: #{label_encoder_forward.1} parent=47 // pred_check_branch
          %630 = sbr.rel (%p628) target = $region52
        $region51: #{label_encoder_forward.1} parent=47 // pred_region
          %s632 = ssub.s32 128, 128
          %633 = vsyncadd %s624, %s632
          %s634 = smul.addr %s21, 128
          %s635 = scalar_lea.hbm %s7, %s634
          %s637 = sshll.u32 %s627, 4
          %s638 = int_to_ptr.vmem [resolvable:$true] %s637
          %640 = dma.vmem_to_hbm [thread:$0]  %s638, 128, %s635, %s624
        $region52: #{label_encoder_forward.1} parent=47 // pred_fallthru
          _
      $region48: #{label_encoder_forward.1} parent=5 // pred_fallthru
        _
      %p641 = scmp.le.s32.totalorder 2, %s16
      // Predicated region
      $region53: #{label_encoder_forward.1} parent=5 // pred_check
        %p642 = pneg %p641
      $region54: #{label_encoder_forward.1} parent=5 // pred_check_branch
        %644 = sbr.rel (%p642) target = $region56
      $region55: #{label_encoder_forward.1} parent=5 // pred_region
        %s645 = ssub.s32 %s16, 2
        // Predicated region
        $region57: #{label_encoder_forward.1} parent=55 // pred_check
          %p646 = pneg %p197
        $region58: #{label_encoder_forward.1} parent=55 // pred_check_branch
          %648 = sbr.rel (%p646) target = $region60
        $region59: #{label_encoder_forward.1} parent=55 // pred_region
          %s649 = sand.u32 %s182, 1
          %s650 = scalar_lea.sflag [#allocation3], %s649
          %s651 = sand.u32 %s182, 1
          %s652 = smul.addr %s651, 8
          %s653 = scalar_lea.vmem [#allocation2], %s652
          %654 = dma.done %s650, 128
        $region60: #{label_encoder_forward.1} parent=55 // pred_fallthru
          _
      $region56: #{label_encoder_forward.1} parent=5 // pred_fallthru
        _
    $region6: #{label_encoder_forward.1} parent=1 // loop_footer
      %s20 = sadd.s32 1, %s16
    $region7: #{label_encoder_forward.1} parent=1 // loop_footer_branch
      %15 = sbr.rel target = $region3
    $region8: #{label_encoder_forward.1} parent=1 // loop_exit
      _
    %655 = vsyncpa [#allocation3], 1
    %s656 = scalar_lea.sflag [#allocation3], 1
    %657 = vsyncpa %s656, 1

</llo_original>
